<compile_context>
chip_gen: v7x
topology: tpu7x:2x2x1
jax: 0.10.0
libtpu: 0.0.40
codegen_flags: <defaults>
</compile_context>

<pallas_src>
import functools

import jax
import jax.numpy as jnp
from jax.experimental import pallas as pl
from jax.experimental.pallas import tpu as pltpu


def _round_up(x, m):
    return (x + m - 1) // m * m


_VMEM_LIMIT = 32 * 1024 * 1024  # explicit scoped-VMEM budget (safe on v5e/v6e/v7x)
_FUSED_PATH_BYTES = 6 * 1024 * 1024  # rough VMEM footprint cutoff for the fused path


# ----------------------------------------------------------------------------
# Kernel A (small shapes): fully fused conv-matmul + BN(batch stats) + LeakyReLU
# ----------------------------------------------------------------------------
def _fused_kernel(x_ref, w_ref, g_ref, b_ref, o_ref, *, count, eps, slope):
    z = jnp.dot(x_ref[...], w_ref[...], preferred_element_type=jnp.float32)
    inv_count = 1.0 / count                       # true M (zero pad rows excluded)
    mean = jnp.sum(z, axis=0, keepdims=True) * inv_count
    var = jnp.sum(z * z, axis=0, keepdims=True) * inv_count - mean * mean
    var = jnp.maximum(var, 0.0)                   # guard E[z^2]-mean^2 round-off
    scale = g_ref[...] * jax.lax.rsqrt(var + eps)
    shift = b_ref[...] - mean * scale
    zn = z * scale + shift
    o_ref[...] = jnp.where(zn > 0, zn, slope * zn).astype(o_ref.dtype)


# ----------------------------------------------------------------------------
# Kernel B1: tiled matmul with fused per-tile BN partial statistics
#            (bf16 operands, f32 accumulator; z stored as bf16)
# ----------------------------------------------------------------------------
def _matmul_stats_kernel(x_ref, w_ref, z_ref, psum_ref, psq_ref, acc_ref):
    @pl.when(pl.program_id(2) == 0)
    def _():
        acc_ref[...] = jnp.zeros_like(acc_ref)

    acc_ref[...] += jnp.dot(x_ref[...], w_ref[...],
                            preferred_element_type=jnp.float32)

    @pl.when(pl.program_id(2) == pl.num_programs(2) - 1)
    def _():
        z = acc_ref[...]
        z_ref[...] = z.astype(z_ref.dtype)
        # BN partial stats come for free from the VMEM-resident f32 accumulator.
        psum_ref[...] = jnp.sum(z, axis=0, keepdims=True)[None]
        psq_ref[...] = jnp.sum(z * z, axis=0, keepdims=True)[None]


# Kernel B1' : same as above but no K reduction -> no scratch, no init/finalize.
def _matmul_stats_kernel_nok(x_ref, w_ref, z_ref, psum_ref, psq_ref):
    z = jnp.dot(x_ref[...], w_ref[...], preferred_element_type=jnp.float32)
    z_ref[...] = z.astype(z_ref.dtype)
    psum_ref[...] = jnp.sum(z, axis=0, keepdims=True)[None]
    psq_ref[...] = jnp.sum(z * z, axis=0, keepdims=True)[None]


# ----------------------------------------------------------------------------
# Kernel B2: z*scale + shift + LeakyReLU(0.2)   (scale/shift precomputed once)
# ----------------------------------------------------------------------------
def _scale_shift_lrelu_kernel(z_ref, scale_ref, shift_ref, o_ref, *, slope):
    z = z_ref[...].astype(jnp.float32)
    zn = z * scale_ref[...] + shift_ref[...]
    o_ref[...] = jnp.where(zn > 0, zn, slope * zn).astype(o_ref.dtype)


# ----------------------------------------------------------------------------
# Wrapper: LeakyReLU(BatchNorm(patches @ w_mat)) with batch statistics over M.
#   patches: (M, Kp) bf16, K already zero-padded to a 128 multiple.
#   w_mat:   (K, Cout) f32.  gamma/beta: (Cout,).  Returns (M, Cout) f32.
# ----------------------------------------------------------------------------
def conv_bn_lrelu_pallas(patches, w_mat, gamma, beta, *, eps=1e-5, slope=0.2,
                         force_grid=False):
    M, Kp = patches.shape
    K, cout = w_mat.shape
    Cp = _round_up(cout, 128)
    m8 = _round_up(M, 8)

    w_p = jnp.pad(w_mat.astype(jnp.bfloat16), ((0, Kp - K), (0, Cp - cout)))
    g_p = jnp.pad(gamma.astype(jnp.float32).reshape(1, cout),
                  ((0, 0), (0, Cp - cout)), constant_values=1.0)
    b_p = jnp.pad(beta.astype(jnp.float32).reshape(1, cout),
                  ((0, 0), (0, Cp - cout)))

    # ---------------- fast path: everything resident in VMEM, one launch -----
    fused_bytes = (m8 * Kp * 2 + Kp * Cp * 2 + 2 * Cp * 4   # inputs
                   + 2 * m8 * Cp * 4)                        # z live + f32 output
    if (not force_grid) and fused_bytes <= _FUSED_PATH_BYTES:
        x_p = jnp.pad(patches, ((0, m8 - M), (0, 0)))
        out_p = pl.pallas_call(
            functools.partial(_fused_kernel, count=float(M), eps=eps, slope=slope),
            out_shape=jax.ShapeDtypeStruct((m8, Cp), jnp.float32),
            compiler_params=pltpu.CompilerParams(vmem_limit_bytes=_VMEM_LIMIT),
        )(x_p, w_p, g_p, b_p)
        return out_p[:M, :cout]

    # ---------------- gridded path (large shapes) ----------------------------
    tile_m = min(512, m8)
    Mp = _round_up(M, tile_m)
    tile_k = 512 if Kp % 512 == 0 else (256 if Kp % 256 == 0 else 128)
    tile_n = 256 if Cp % 256 == 0 else 128

    x_p = jnp.pad(patches, ((0, Mp - M), (0, 0)))
    n_m, n_n, n_k = Mp // tile_m, Cp // tile_n, Kp // tile_k

    out_shapes = (jax.ShapeDtypeStruct((Mp, Cp), jnp.bfloat16),       # z (bf16!)
                  jax.ShapeDtypeStruct((n_m, 1, Cp), jnp.float32),    # partial sum
                  jax.ShapeDtypeStruct((n_m, 1, Cp), jnp.float32))    # partial sumsq
    cost = pl.CostEstimate(
        flops=2 * Mp * Kp * Cp, transcendentals=0,
        bytes_accessed=Mp * Kp * 2 + Kp * Cp * 2 + Mp * Cp * 2 + 2 * n_m * Cp * 4)

    if n_k == 1:
        # No K reduction: skip the accumulator scratch and the pl.when branches.
        z, psum, psq = pl.pallas_call(
            _matmul_stats_kernel_nok,
            out_shape=out_shapes,
            grid_spec=pltpu.PrefetchScalarGridSpec(
                num_scalar_prefetch=0, grid=(n_m, n_n),
                in_specs=[pl.BlockSpec((tile_m, Kp), lambda i, j: (i, 0)),
                          pl.BlockSpec((Kp, tile_n), lambda i, j: (0, j))],
                out_specs=[pl.BlockSpec((tile_m, tile_n), lambda i, j: (i, j)),
                           pl.BlockSpec((1, 1, tile_n), lambda i, j: (i, 0, j)),
                           pl.BlockSpec((1, 1, tile_n), lambda i, j: (i, 0, j))]),
            compiler_params=pltpu.CompilerParams(
                dimension_semantics=("parallel", "parallel"),
                vmem_limit_bytes=_VMEM_LIMIT),
            cost_estimate=cost,
        )(x_p, w_p)
    else:
        z, psum, psq = pl.pallas_call(
            _matmul_stats_kernel,
            out_shape=out_shapes,
            grid_spec=pltpu.PrefetchScalarGridSpec(
                num_scalar_prefetch=0, grid=(n_m, n_n, n_k),
                in_specs=[pl.BlockSpec((tile_m, tile_k), lambda i, j, k: (i, k)),
                          pl.BlockSpec((tile_k, tile_n), lambda i, j, k: (k, j))],
                out_specs=[pl.BlockSpec((tile_m, tile_n), lambda i, j, k: (i, j)),
                           pl.BlockSpec((1, 1, tile_n), lambda i, j, k: (i, 0, j)),
                           pl.BlockSpec((1, 1, tile_n), lambda i, j, k: (i, 0, j))],
                scratch_shapes=[pltpu.VMEM((tile_m, tile_n), jnp.float32)]),
            compiler_params=pltpu.CompilerParams(
                dimension_semantics=("parallel", "parallel", "arbitrary"),
                vmem_limit_bytes=_VMEM_LIMIT),
            cost_estimate=cost,
        )(x_p, w_p)

    # Tiny (n_m, Cp)-sized reduction + BN parameter folding in plain JAX.
    inv_count = 1.0 / float(M)                    # true M (pad rows are all-zero)
    mean = jnp.sum(psum, axis=0) * inv_count                      # (1, Cp)
    var = jnp.maximum(jnp.sum(psq, axis=0) * inv_count - mean * mean, 0.0)
    scale = g_p * jax.lax.rsqrt(var + eps)                        # (1, Cp)
    shift = b_p - mean * scale                                    # (1, Cp)

    out_p = pl.pallas_call(
        functools.partial(_scale_shift_lrelu_kernel, slope=slope),
        out_shape=jax.ShapeDtypeStruct((Mp, Cp), jnp.float32),
        grid_spec=pltpu.PrefetchScalarGridSpec(
            num_scalar_prefetch=0, grid=(n_m,),
            in_specs=[pl.BlockSpec((tile_m, Cp), lambda i: (i, 0)),
                      pl.BlockSpec((1, Cp), lambda i: (0, 0)),
                      pl.BlockSpec((1, Cp), lambda i: (0, 0))],
            out_specs=pl.BlockSpec((tile_m, Cp), lambda i: (i, 0))),
        compiler_params=pltpu.CompilerParams(
            dimension_semantics=("parallel",),
            vmem_limit_bytes=_VMEM_LIMIT),
    )(z, scale, shift)

    return out_p[:M, :cout]


# ----------------------------------------------------------------------------
# JAX glue: im2col patch extraction (conv has padding=0, so padding_mode
# 'reflect' is a no-op) and NCHW <-> NHWC plumbing.  The bf16 cast is done on
# the raw input and the K zero-padding is fused into the concat.
# ----------------------------------------------------------------------------
def extract_patches(x, k, stride, k_pad):
    # TODO(synk): fully eliminate the 16x-duplicated im2col materialization by
    # lowering the conv as per-(kh,kw)-tap matmuls accumulating in VMEM (or a
    # scalar-prefetched data-dependent LHS index_map).
    n, h, w, c = x.shape
    ho = (h - k) // stride + 1
    wo = (w - k) // stride + 1
    cols = []
    for kh in range(k):
        for kw in range(k):
            cols.append(x[:, kh:kh + stride * (ho - 1) + 1:stride,
                          kw:kw + stride * (wo - 1) + 1:stride, :])
    if k_pad:
        cols.append(jnp.zeros((n, ho, wo, k_pad), dtype=x.dtype))
    patches = jnp.concatenate(cols, axis=-1)
    return patches.reshape(n * ho * wo, k * k * c + k_pad), ho, wo


def cnn_block_forward(x_nchw, w, gamma, beta, *, stride, eps=1e-5, slope=0.2,
                      force_grid=False):
    # Conv2d(in, out, 4, stride, bias=False, padding=0) -> BN (batch stats)
    # -> LeakyReLU(0.2); matches the torch CNNBlock forward in training mode.
    x = jnp.transpose(x_nchw, (0, 2, 3, 1)).astype(jnp.bfloat16)   # NCHW -> NHWC
    k, _, cin, cout = w.shape
    n = x.shape[0]
    kk = k * k * cin
    k_pad = _round_up(kk, 128) - kk
    patches, ho, wo = extract_patches(x, k, stride, k_pad)
    w_mat = w.reshape(kk, cout)
    out = conv_bn_lrelu_pallas(patches, w_mat, gamma, beta,
                               eps=eps, slope=slope, force_grid=force_grid)
    out = out.reshape(n, ho, wo, cout)
    return jnp.transpose(out, (0, 3, 1, 2))                        # NHWC -> NCHW


def cnn_block_reference(x_nchw, w, gamma, beta, *, stride, eps=1e-5, slope=0.2):
    x = jnp.transpose(x_nchw, (0, 2, 3, 1))
    z = jax.lax.conv_general_dilated(
        x, w, window_strides=(stride, stride), padding='VALID',
        dimension_numbers=('NHWC', 'HWIO', 'NHWC'))
    mean = jnp.mean(z, axis=(0, 1, 2), keepdims=True)
    var = jnp.mean(jnp.square(z - mean), axis=(0, 1, 2), keepdims=True)
    zn = (z - mean) * jax.lax.rsqrt(var + eps) * gamma + beta
    zn = jnp.where(zn > 0, zn, slope * zn)
    return jnp.transpose(zn, (0, 3, 1, 2))


if __name__ == "__main__":
    # ------- Test 1: CNNBlock(4, 64, stride=2) on (2, 4, 16, 16) -> fused path
    key = jax.random.PRNGKey(0)
    kx, kw, kg, kb = jax.random.split(key, 4)
    N, CIN, H, W = 2, 4, 16, 16
    COUT, KSIZE, STRIDE = 64, 4, 2

    x = jax.random.normal(kx, (N, CIN, H, W), dtype=jnp.float32)
    w = (jax.random.normal(kw, (KSIZE, KSIZE, CIN, COUT), dtype=jnp.float32)
         / jnp.sqrt(jnp.float32(KSIZE * KSIZE * CIN)))
    gamma = 1.0 + 0.1 * jax.random.normal(kg, (COUT,), dtype=jnp.float32)
    beta = 0.1 * jax.random.normal(kb, (COUT,), dtype=jnp.float32)

    fwd = jax.jit(functools.partial(cnn_block_forward, stride=STRIDE))
    out = jax.block_until_ready(fwd(x, w, gamma, beta))
    ho = (H - KSIZE) // STRIDE + 1
    assert out.shape == (N, COUT, ho, ho), out.shape
    assert out.dtype == jnp.float32
    ref = cnn_block_reference(x, w, gamma, beta, stride=STRIDE)
    err1 = float(jnp.max(jnp.abs(out - ref)))
    assert bool(jnp.allclose(out, ref, atol=5e-2, rtol=5e-2)), err1

    # ------- Test 2: exercise the gridded path (matmul + fused BN stats,
    #         K reduction with the f32 accumulator, bf16 z, scale/shift pass)
    CIN2, COUT2 = 48, 192
    kx2, kw2, kg2, kb2 = jax.random.split(jax.random.PRNGKey(1), 4)
    x2 = jax.random.normal(kx2, (N, CIN2, H, W), dtype=jnp.float32)
    w2 = (jax.random.normal(kw2, (KSIZE, KSIZE, CIN2, COUT2), dtype=jnp.float32)
          / jnp.sqrt(jnp.float32(KSIZE * KSIZE * CIN2)))
    gamma2 = 1.0 + 0.1 * jax.random.normal(kg2, (COUT2,), dtype=jnp.float32)
    beta2 = 0.1 * jax.random.normal(kb2, (COUT2,), dtype=jnp.float32)

    fwd_grid = jax.jit(functools.partial(cnn_block_forward, stride=STRIDE,
                                         force_grid=True))
    out2 = jax.block_until_ready(fwd_grid(x2, w2, gamma2, beta2))
    ref2 = cnn_block_reference(x2, w2, gamma2, beta2, stride=STRIDE)
    err2 = float(jnp.max(jnp.abs(out2 - ref2)))
    assert bool(jnp.allclose(out2, ref2, atol=5e-2, rtol=5e-2)), err2

    print("KERNEL_OK")
</pallas_src>

<mosaic_0001>
module attributes {stable_mosaic.version = 11 : i64} {
  func.func @_fused_kernel(%arg0: memref<104x128xbf16, #tpu.memory_space<vmem>>, %arg1: memref<128x128xbf16, #tpu.memory_space<vmem>>, %arg2: memref<1x128xf32, #tpu.memory_space<vmem>>, %arg3: memref<1x128xf32, #tpu.memory_space<vmem>>, %arg4: memref<104x128xf32, #tpu.memory_space<vmem>>) attributes {dimension_semantics = [], scalar_prefetch = 0 : i64, scratch_operands = 0 : i64, tpu.core_type = #tpu.core_type<tc>} {
    %c0 = arith.constant 0 : index
    %c0_0 = arith.constant 0 : index
    %0 = vector.load %arg0[%c0, %c0_0] : memref<104x128xbf16, #tpu.memory_space<vmem>>, vector<104x128xbf16>
    %c0_1 = arith.constant 0 : index
    %c0_2 = arith.constant 0 : index
    %1 = vector.load %arg1[%c0_1, %c0_2] : memref<128x128xbf16, #tpu.memory_space<vmem>>, vector<128x128xbf16>
    %cst = arith.constant dense<0.000000e+00> : vector<104x128xf32>
    %2 = tpu.matmul %0, %1, %cst {dimension_numbers = #tpu.dot_dimension_numbers<[1], [0], [0], [1], [0, 0, 1, 1], [], []>} : vector<104x128xbf16>, vector<128x128xbf16>, vector<104x128xf32> -> vector<104x128xf32>
    %cst_3 = arith.constant dense<0.000000e+00> : vector<128xf32>
    %3 = vector.multi_reduction <add>, %2, %cst_3 [0] : vector<104x128xf32> to vector<128xf32>
    %4 = vector.shape_cast %3 : vector<128xf32> to vector<1x128xf32>
    %cst_4 = arith.constant 0.0102040814 : f32
    %5 = vector.broadcast %cst_4 : f32 to vector<1x128xf32>
    %6 = arith.mulf %4, %5 : vector<1x128xf32>
    %7 = arith.mulf %2, %2 : vector<104x128xf32>
    %cst_5 = arith.constant dense<0.000000e+00> : vector<128xf32>
    %8 = vector.multi_reduction <add>, %7, %cst_5 [0] : vector<104x128xf32> to vector<128xf32>
    %9 = vector.shape_cast %8 : vector<128xf32> to vector<1x128xf32>
    %cst_6 = arith.constant 0.0102040814 : f32
    %10 = vector.broadcast %cst_6 : f32 to vector<1x128xf32>
    %11 = arith.mulf %9, %10 : vector<1x128xf32>
    %12 = arith.mulf %6, %6 : vector<1x128xf32>
    %13 = arith.subf %11, %12 : vector<1x128xf32>
    %cst_7 = arith.constant 0.000000e+00 : f32
    %14 = vector.broadcast %cst_7 : f32 to vector<1x128xf32>
    %15 = arith.maximumf %13, %14 : vector<1x128xf32>
    %c0_8 = arith.constant 0 : index
    %c0_9 = arith.constant 0 : index
    %16 = vector.load %arg2[%c0_8, %c0_9] : memref<1x128xf32, #tpu.memory_space<vmem>>, vector<1x128xf32>
    %cst_10 = arith.constant 9.99999974E-6 : f32
    %17 = vector.broadcast %cst_10 : f32 to vector<1x128xf32>
    %18 = arith.addf %15, %17 : vector<1x128xf32>
    %19 = math.rsqrt %18 : vector<1x128xf32>
    %20 = arith.mulf %16, %19 : vector<1x128xf32>
    %c0_11 = arith.constant 0 : index
    %c0_12 = arith.constant 0 : index
    %21 = vector.load %arg3[%c0_11, %c0_12] : memref<1x128xf32, #tpu.memory_space<vmem>>, vector<1x128xf32>
    %22 = arith.mulf %6, %20 : vector<1x128xf32>
    %23 = arith.subf %21, %22 : vector<1x128xf32>
    %24 = vector.broadcast %20 : vector<1x128xf32> to vector<104x128xf32>
    %25 = arith.mulf %2, %24 : vector<104x128xf32>
    %26 = vector.broadcast %23 : vector<1x128xf32> to vector<104x128xf32>
    %27 = arith.addf %25, %26 : vector<104x128xf32>
    %cst_13 = arith.constant 0.000000e+00 : f32
    %28 = vector.broadcast %cst_13 : f32 to vector<104x128xf32>
    %29 = arith.cmpf ogt, %27, %28 : vector<104x128xf32>
    %cst_14 = arith.constant 2.000000e-01 : f32
    %30 = vector.broadcast %cst_14 : f32 to vector<104x128xf32>
    %31 = arith.mulf %30, %27 : vector<104x128xf32>
    %32 = arith.select %29, %27, %31 : vector<104x128xi1>, vector<104x128xf32>
    %c0_15 = arith.constant 0 : index
    %c0_16 = arith.constant 0 : index
    %33 = vector.load %arg4[%c0_15, %c0_16] : memref<104x128xf32, #tpu.memory_space<vmem>>, vector<104x128xf32>
    tpu.vector_store %arg4[%c0_15, %c0_16], %32 {strides = array<i32>} : memref<104x128xf32, #tpu.memory_space<vmem>>, vector<104x128xf32>,
    return
  }
}

</mosaic_0001>

<llo_original>
// kernel: cnn_block_forward.1
$region0: #{cnn_block_forward.1}
  #allocation0 [shape = 'u32[]', space=smem, size = 0x4, offset = 0x4, fixed_abs, tag = 'smem constant byte address 0x4 - core index']
  #allocation1 [shape = 'u32[144,128]{1,0:T(1,128)}', space=vmem, size = 0x12000, scoped, tag = 'internal scratch']
  %s0 = inlined_call_operand.vmem [shape: bf16[104,128], index: 0, kind: input, shape index: {}]
  %s1 = inlined_call_operand.vmem [shape: bf16[128,128], index: 1, kind: input, shape index: {}]
  %s2 = inlined_call_operand.vmem [shape: f32[1,128], index: 2, kind: input, shape index: {}]
  %s3 = inlined_call_operand.vmem [shape: f32[1,128], index: 3, kind: input, shape index: {}]
  %s4 = inlined_call_operand.vmem [shape: f32[104,128], index: 4, kind: output, shape index: {}]
  %s5 = sld [smem:[#allocation0]]
  $region26: #{cnn_block_forward.1} parent=0
    _
  %s7 = ssub.s32 1, %s5
  %s8 = scalar_select 0, %s7, %s5
  // Predicated region
  $region2: #{cnn_block_forward.1} parent=0 // pred_check
    _
  $region3: #{cnn_block_forward.1} parent=0 // pred_check_branch
    %10 = sbr.rel (0) target = $region5
  $region4: #{cnn_block_forward.1} parent=0 // pred_region
    _
  $region5: #{cnn_block_forward.1} parent=0 // pred_fallthru
    _
  // Predicated region
  $region6: #{cnn_block_forward.1} parent=0 // pred_check
    _
  $region7: #{cnn_block_forward.1} parent=0 // pred_check_branch
    %12 = sbr.rel (0) target = $region9
  $region8: #{cnn_block_forward.1} parent=0 // pred_region
    _
  $region9: #{cnn_block_forward.1} parent=0 // pred_fallthru
    _
  // Predicated region
  $region10: #{cnn_block_forward.1} parent=0 // pred_check
    _
  $region11: #{cnn_block_forward.1} parent=0 // pred_check_branch
    %14 = sbr.rel (0) target = $region13
  $region12: #{cnn_block_forward.1} parent=0 // pred_region
    _
  $region13: #{cnn_block_forward.1} parent=0 // pred_fallthru
    _
  // Predicated region
  $region14: #{cnn_block_forward.1} parent=0 // pred_check
    _
  $region15: #{cnn_block_forward.1} parent=0 // pred_check_branch
    %16 = sbr.rel (0) target = $region17
  $region16: #{cnn_block_forward.1} parent=0 // pred_region
    _
  $region17: #{cnn_block_forward.1} parent=0 // pred_fallthru
    _
  %v18 = vld [vmem:[%s0] sm:$0xf]
  %v19 = vld [vmem:[%s0 + $0x4] sm:$0xf]
  %v20 = vld [vmem:[%s0 + $0x8] sm:$0xf]
  %v21 = vld [vmem:[%s0 + $0xc] sm:$0xf]
  %v22 = vld [vmem:[%s0 + $0x10] sm:$0xf]
  %v23 = vld [vmem:[%s0 + $0x14] sm:$0xf]
  %v24 = vld [vmem:[%s0 + $0x18] sm:$0xf]
  %v25 = vld [vmem:[%s0 + $0x1c] sm:$0xf]
  %v26 = vld [vmem:[%s0 + $0x20] sm:$0xf]
  %v27 = vld [vmem:[%s0 + $0x24] sm:$0xf]
  %v28 = vld [vmem:[%s0 + $0x28] sm:$0xf]
  %v29 = vld [vmem:[%s0 + $0x2c] sm:$0xf]
  %v30 = vld [vmem:[%s0 + $0x30] sm:$0xf]
  %v31 = vld [vmem:[%s1] sm:$0xf]
  %v32 = vld [vmem:[%s1 + $0x4] sm:$0xf]
  %v33 = vld [vmem:[%s1 + $0x8] sm:$0xf]
  %v34 = vld [vmem:[%s1 + $0xc] sm:$0xf]
  %v35 = vld [vmem:[%s1 + $0x10] sm:$0xf]
  %v36 = vld [vmem:[%s1 + $0x14] sm:$0xf]
  %v37 = vld [vmem:[%s1 + $0x18] sm:$0xf]
  %v38 = vld [vmem:[%s1 + $0x1c] sm:$0xf]
  %v39 = vld [vmem:[%s1 + $0x20] sm:$0xf]
  %v40 = vld [vmem:[%s1 + $0x24] sm:$0xf]
  %v41 = vld [vmem:[%s1 + $0x28] sm:$0xf]
  %v42 = vld [vmem:[%s1 + $0x2c] sm:$0xf]
  %v43 = vld [vmem:[%s1 + $0x30] sm:$0xf]
  %v44 = vld [vmem:[%s1 + $0x34] sm:$0xf]
  %v45 = vld [vmem:[%s1 + $0x38] sm:$0xf]
  %v46 = vld [vmem:[%s1 + $0x3c] sm:$0xf]
  %v60 = vunpack.c.l.b16 %v18
  %v61 = vunpack.c.l.b16 %v19
  %v62 = vunpack.c.l.b16 %v20
  %v63 = vunpack.c.l.b16 %v21
  %v64 = vunpack.c.l.b16 %v22
  %v65 = vunpack.c.l.b16 %v23
  %v66 = vunpack.c.l.b16 %v24
  %v67 = vunpack.c.l.b16 %v25
  %v68 = vunpack.c.l.b16 %v26
  %v69 = vunpack.c.l.b16 %v27
  %v70 = vunpack.c.l.b16 %v28
  %v71 = vunpack.c.l.b16 %v29
  %v72 = vunpack.c.l.b16 %v30
  %v73 = vpack.c.b16 %v61, %v60
  %v74 = vpack.c.b16 %v63, %v62
  %v75 = vpack.c.b16 %v65, %v64
  %v76 = vpack.c.b16 %v67, %v66
  %v77 = vpack.c.b16 %v69, %v68
  %v78 = vpack.c.b16 %v71, %v70
  %v79 = vpack.c.b16 %v72, %v72
  %v103 = vunpack.c.l.b16 %v31
  %v104 = vunpack.c.l.b16 %v32
  %v105 = vunpack.c.l.b16 %v33
  %v106 = vunpack.c.l.b16 %v34
  %v107 = vunpack.c.l.b16 %v35
  %v108 = vunpack.c.l.b16 %v36
  %v109 = vunpack.c.l.b16 %v37
  %v110 = vunpack.c.l.b16 %v38
  %v111 = vunpack.c.l.b16 %v39
  %v112 = vunpack.c.l.b16 %v40
  %v113 = vunpack.c.l.b16 %v41
  %v114 = vunpack.c.l.b16 %v42
  %v115 = vunpack.c.l.b16 %v43
  %v116 = vunpack.c.l.b16 %v44
  %v117 = vunpack.c.l.b16 %v45
  %v118 = vunpack.c.l.b16 %v46
  %v119 = vpack.c.b16 %v104, %v103
  %v120 = vpack.c.b16 %v106, %v105
  %v121 = vpack.c.b16 %v108, %v107
  %v122 = vpack.c.b16 %v110, %v109
  %v123 = vpack.c.b16 %v112, %v111
  %v124 = vpack.c.b16 %v114, %v113
  %v125 = vpack.c.b16 %v116, %v115
  %v126 = vpack.c.b16 %v118, %v117
  %135 = vmatprep.subr.bf16.mxu0 0
  %136 = vmatpush1.bf16.msra.mxu0 %v119
  %137 = vmatprep.subr.bf16.mxu0 0
  %138 = vmatpush1.bf16.msra.mxu0 %v120
  %139 = vmatprep.subr.bf16.mxu0 0
  %140 = vmatpush1.bf16.msra.mxu0 %v121
  %141 = vmatprep.subr.bf16.mxu0 0
  %142 = vmatpush1.bf16.msra.mxu0 %v122
  %143 = vmatprep.subr.bf16.mxu0 0
  %144 = vmatpush1.bf16.msra.mxu0 %v123
  %145 = vmatprep.subr.bf16.mxu0 0
  %146 = vmatpush1.bf16.msra.mxu0 %v124
  %147 = vmatprep.subr.bf16.mxu0 0
  %148 = vmatpush1.bf16.msra.mxu0 %v125
  %149 = vmatprep.subr.bf16.mxu0 0
  %150 = vmatpush1.bf16.msra.mxu0 %v126
  %151 = vmatprep.subr.bf16.mxu0 0
  %152 = vmatpush1.bf16.msra.mxu0 0
  %153 = vmatprep.subr.bf16.mxu0 0
  %154 = vmatpush1.bf16.msra.mxu0 0
  %155 = vmatprep.subr.bf16.mxu0 0
  %156 = vmatpush1.bf16.msra.mxu0 0
  %157 = vmatprep.subr.bf16.mxu0 0
  %158 = vmatpush1.bf16.msra.mxu0 0
  %159 = vmatprep.subr.bf16.mxu0 0
  %160 = vmatpush1.bf16.msra.mxu0 0
  %161 = vmatprep.subr.bf16.mxu0 0
  %162 = vmatpush1.bf16.msra.mxu0 0
  %163 = vmatprep.subr.bf16.mxu0 0
  %164 = vmatpush1.bf16.msra.mxu0 0
  %165 = vmatprep.subr.bf16.mxu0 0
  %166 = vmatpush1.bf16.msra.mxu0 0
  %167 = vmatprep.mubr.bf16.mxu0 0
  %168 = vmatmul.mubr.bf16.gmra.mrb[0].mxu0 %v73
  %v169 = vpop.f32.mrb[0].mxu0
  %v170 = vadd.f32 0.0, %v169
  %v171 = vpop.f32.mrb[0].mxu0
  %v172 = vpop.f32.mrb[0].mxu0
  %v173 = vadd.f32 0.0, %v172
  %v174 = vpop.f32.mrb[0].mxu0
  %175 = vmatprep.mubr.bf16.mxu0 0
  %176 = vmatmul.mubr.bf16.gmra.mrb[0].mxu0 %v74
  %v177 = vpop.f32.mrb[0].mxu0
  %v178 = vadd.f32 0.0, %v177
  %v179 = vpop.f32.mrb[0].mxu0
  %v180 = vpop.f32.mrb[0].mxu0
  %v181 = vadd.f32 0.0, %v180
  %v182 = vpop.f32.mrb[0].mxu0
  %183 = vmatprep.mubr.bf16.mxu0 0
  %184 = vmatmul.mubr.bf16.gmra.mrb[0].mxu0 %v75
  %v185 = vpop.f32.mrb[0].mxu0
  %v186 = vadd.f32 0.0, %v185
  %v187 = vpop.f32.mrb[0].mxu0
  %v188 = vpop.f32.mrb[0].mxu0
  %v189 = vadd.f32 0.0, %v188
  %v190 = vpop.f32.mrb[0].mxu0
  %191 = vmatprep.mubr.bf16.mxu0 0
  %192 = vmatmul.mubr.bf16.gmra.mrb[0].mxu0 %v76
  %v193 = vpop.f32.mrb[0].mxu0
  %v194 = vadd.f32 0.0, %v193
  %v195 = vpop.f32.mrb[0].mxu0
  %v196 = vpop.f32.mrb[0].mxu0
  %v197 = vadd.f32 0.0, %v196
  %v198 = vpop.f32.mrb[0].mxu0
  %199 = vmatprep.mubr.bf16.mxu0 0
  %200 = vmatmul.mubr.bf16.gmra.mrb[0].mxu0 %v77
  %v201 = vpop.f32.mrb[0].mxu0
  %v202 = vadd.f32 0.0, %v201
  %v203 = vpop.f32.mrb[0].mxu0
  %v204 = vpop.f32.mrb[0].mxu0
  %v205 = vadd.f32 0.0, %v204
  %v206 = vpop.f32.mrb[0].mxu0
  %207 = vmatprep.mubr.bf16.mxu0 0
  %208 = vmatmul.mubr.bf16.gmra.mrb[0].mxu0 %v78
  %v209 = vpop.f32.mrb[0].mxu0
  %v210 = vadd.f32 0.0, %v209
  %v211 = vpop.f32.mrb[0].mxu0
  %v212 = vpop.f32.mrb[0].mxu0
  %v213 = vadd.f32 0.0, %v212
  %v214 = vpop.f32.mrb[0].mxu0
  %215 = vmatprep.mubr.bf16.mxu0 0
  %216 = vmatmul.mubr.bf16.gmra.mrb[0].mxu0 %v79
  %v217 = vpop.f32.mrb[0].mxu0
  %v218 = vadd.f32 0.0, %v217
  %v219 = vpop.f32.mrb[0].mxu0
  %v220 = vpop.f32.mrb[0].mxu0
  %v221 = vpop.f32.mrb[0].mxu0
  %222 = vdwg.mxu0
  %v223 = vadd.f32 %v170, %v173
  %v224 = vadd.f32 %v223, %v178
  %v225 = vadd.f32 %v224, %v181
  %v226 = vadd.f32 %v225, %v186
  %v227 = vadd.f32 %v226, %v189
  %v228 = vadd.f32 %v227, %v194
  %v229 = vadd.f32 %v228, %v197
  %v230 = vadd.f32 %v229, %v202
  %v231 = vadd.f32 %v230, %v205
  %v232 = vadd.f32 %v231, %v210
  %v233 = vadd.f32 %v232, %v213
  %v234 = vadd.f32 %v233, %v218
  %v235 = vrot.slane %v234, 4
  %v236 = vadd.f32 %v234, %v235
  %v237 = vrot.slane %v236, 2
  %v238 = vadd.f32 %v236, %v237
  %v239 = vrot.slane %v238, 1
  %v240 = vadd.f32 %v238, %v239
  %v241 = vmul.f32 %v240, 0.010204081
  %v242 = vmul.f32 %v170, %v170
  %v243 = vmul.f32 %v173, %v173
  %v244 = vmul.f32 %v178, %v178
  %v245 = vmul.f32 %v181, %v181
  %v246 = vmul.f32 %v186, %v186
  %v247 = vmul.f32 %v189, %v189
  %v248 = vmul.f32 %v194, %v194
  %v249 = vmul.f32 %v197, %v197
  %v250 = vmul.f32 %v202, %v202
  %v251 = vmul.f32 %v205, %v205
  %v252 = vmul.f32 %v210, %v210
  %v253 = vmul.f32 %v213, %v213
  %v254 = vmul.f32 %v218, %v218
  %v255 = vadd.f32 %v242, %v243
  %v256 = vadd.f32 %v255, %v244
  %v257 = vadd.f32 %v256, %v245
  %v258 = vadd.f32 %v257, %v246
  %v259 = vadd.f32 %v258, %v247
  %v260 = vadd.f32 %v259, %v248
  %v261 = vadd.f32 %v260, %v249
  %v262 = vadd.f32 %v261, %v250
  %v263 = vadd.f32 %v262, %v251
  %v264 = vadd.f32 %v263, %v252
  %v265 = vadd.f32 %v264, %v253
  %v266 = vadd.f32 %v265, %v254
  %v267 = vrot.slane %v266, 4
  %v268 = vadd.f32 %v266, %v267
  %v269 = vrot.slane %v268, 2
  %v270 = vadd.f32 %v268, %v269
  %v271 = vrot.slane %v270, 1
  %v272 = vadd.f32 %v270, %v271
  %v273 = vmul.f32 %v272, 0.010204081
  %v274 = vmul.f32 %v241, %v241
  %v275 = vsub.f32 %v273, %v274
  %v276 = vmax.f32 %v275, 0.0
  %v277 = vld [vmem:[%s2] sm:$0x1]
  %v278 = vadd.f32 %v276, 1e-05
  %v279 = vrsqrt.pop %v278
  %v280 = vmul.f32 %v277, %v279
  %v281 = vld [vmem:[%s3] sm:$0x1]
  %v282 = vmul.f32 %v241, %v280
  %v283 = vsub.f32 %v281, %v282
  %v285 = vlaneseq
  %v286 = vshrl.u32 %v285, 7
  %v287 = vsub.s32 0, %v286
  %v288 = vrot.slane %v280, %v287
  %v290 = vmul.f32 %v170, %v288
  %v291 = vmul.f32 %v173, %v288
  %v292 = vmul.f32 %v178, %v288
  %v293 = vmul.f32 %v181, %v288
  %v294 = vmul.f32 %v186, %v288
  %v295 = vmul.f32 %v189, %v288
  %v296 = vmul.f32 %v194, %v288
  %v297 = vmul.f32 %v197, %v288
  %v298 = vmul.f32 %v202, %v288
  %v299 = vmul.f32 %v205, %v288
  %v300 = vmul.f32 %v210, %v288
  %v301 = vmul.f32 %v213, %v288
  %v302 = vmul.f32 %v218, %v288
  %v304 = vlaneseq
  %v305 = vshrl.u32 %v304, 7
  %v306 = vsub.s32 0, %v305
  %v307 = vrot.slane %v283, %v306
  %v309 = vadd.f32 %v290, %v307
  %v310 = vadd.f32 %v291, %v307
  %v311 = vadd.f32 %v292, %v307
  %v312 = vadd.f32 %v293, %v307
  %v313 = vadd.f32 %v294, %v307
  %v314 = vadd.f32 %v295, %v307
  %v315 = vadd.f32 %v296, %v307
  %v316 = vadd.f32 %v297, %v307
  %v317 = vadd.f32 %v298, %v307
  %v318 = vadd.f32 %v299, %v307
  %v319 = vadd.f32 %v300, %v307
  %v320 = vadd.f32 %v301, %v307
  %v321 = vadd.f32 %v302, %v307
  %vm322 = vcmp.gt.f32.partialorder %v309, 0.0
  %vm323 = vcmp.gt.f32.partialorder %v310, 0.0
  %vm324 = vcmp.gt.f32.partialorder %v311, 0.0
  %vm325 = vcmp.gt.f32.partialorder %v312, 0.0
  %vm326 = vcmp.gt.f32.partialorder %v313, 0.0
  %vm327 = vcmp.gt.f32.partialorder %v314, 0.0
  %vm328 = vcmp.gt.f32.partialorder %v315, 0.0
  %vm329 = vcmp.gt.f32.partialorder %v316, 0.0
  %vm330 = vcmp.gt.f32.partialorder %v317, 0.0
  %vm331 = vcmp.gt.f32.partialorder %v318, 0.0
  %vm332 = vcmp.gt.f32.partialorder %v319, 0.0
  %vm333 = vcmp.gt.f32.partialorder %v320, 0.0
  %vm334 = vcmp.gt.f32.partialorder %v321, 0.0
  %v335 = vmul.f32 %v309, 0.2
  %v336 = vmul.f32 %v310, 0.2
  %v337 = vmul.f32 %v311, 0.2
  %v338 = vmul.f32 %v312, 0.2
  %v339 = vmul.f32 %v313, 0.2
  %v340 = vmul.f32 %v314, 0.2
  %v341 = vmul.f32 %v315, 0.2
  %v342 = vmul.f32 %v316, 0.2
  %v343 = vmul.f32 %v317, 0.2
  %v344 = vmul.f32 %v318, 0.2
  %v345 = vmul.f32 %v319, 0.2
  %v346 = vmul.f32 %v320, 0.2
  %v347 = vmul.f32 %v321, 0.2
  %v348 = vsel %vm322, %v309, %v335
  %v349 = vsel %vm323, %v310, %v336
  %v350 = vsel %vm324, %v311, %v337
  %v351 = vsel %vm325, %v312, %v338
  %v352 = vsel %vm326, %v313, %v339
  %v353 = vsel %vm327, %v314, %v340
  %v354 = vsel %vm328, %v315, %v341
  %v355 = vsel %vm329, %v316, %v342
  %v356 = vsel %vm330, %v317, %v343
  %v357 = vsel %vm331, %v318, %v344
  %v358 = vsel %vm332, %v319, %v345
  %v359 = vsel %vm333, %v320, %v346
  %v360 = vsel %vm334, %v321, %v347
  %361 = vst [vmem:[%s4] sm:$0xff] %v348
  %362 = vst [vmem:[%s4 + $0x8] sm:$0xff] %v349
  %363 = vst [vmem:[%s4 + $0x10] sm:$0xff] %v350
  %364 = vst [vmem:[%s4 + $0x18] sm:$0xff] %v351
  %365 = vst [vmem:[%s4 + $0x20] sm:$0xff] %v352
  %366 = vst [vmem:[%s4 + $0x28] sm:$0xff] %v353
  %367 = vst [vmem:[%s4 + $0x30] sm:$0xff] %v354
  %368 = vst [vmem:[%s4 + $0x38] sm:$0xff] %v355
  %369 = vst [vmem:[%s4 + $0x40] sm:$0xff] %v356
  %370 = vst [vmem:[%s4 + $0x48] sm:$0xff] %v357
  %371 = vst [vmem:[%s4 + $0x50] sm:$0xff] %v358
  %372 = vst [vmem:[%s4 + $0x58] sm:$0xff] %v359
  %373 = vst [vmem:[%s4 + $0x60] sm:$0xff] %v360
  // Predicated region
  $region18: #{cnn_block_forward.1} parent=0 // pred_check
    _
  $region19: #{cnn_block_forward.1} parent=0 // pred_check_branch
    %375 = sbr.rel (0) target = $region21
  $region20: #{cnn_block_forward.1} parent=0 // pred_region
    _
  $region21: #{cnn_block_forward.1} parent=0 // pred_fallthru
    _
  // Predicated region
  $region22: #{cnn_block_forward.1} parent=0 // pred_check
    _
  $region23: #{cnn_block_forward.1} parent=0 // pred_check_branch
    %377 = sbr.rel (0) target = $region25
  $region24: #{cnn_block_forward.1} parent=0 // pred_region
    _
  $region25: #{cnn_block_forward.1} parent=0 // pred_fallthru
    _

</llo_original>
